<compile_context>
chip_gen: v6e
topology: v6e:2x2x1
jax: 0.10.0
libtpu: 0.0.40
codegen_flags: <defaults>
</compile_context>

<pallas_src>
import jax
import jax.numpy as jnp
from jax.experimental import pallas as pl
from jax.experimental.pallas import tpu as pltpu


# ----------------------------------------------------------------------------
# Kernel
# ----------------------------------------------------------------------------
def _sep_mlp_kernel(x_ref, w1_ref, b1_ref, w2_ref, b2_ref, o_ref):
    """One grid step = one (batch-tile, feature-group) block.

    x_ref : [Bt, Fb, dim]       f32 activations (feature-group slice of x)
    w1_ref: [Fb, dim, hidden]   bf16
    b1_ref: [Fb, 1, hidden]     f32
    w2_ref: [Fb, hidden, catp]  bf16 (category columns zero-padded to catp)
    b2_ref: [Fb, 1, catp]       f32
    o_ref : [Fb, Bt, catp]      f32
    """
    fb = w1_ref.shape[0]
    # Static unroll over the features of this group.  Same MXU work as a
    # batched contraction (the MXU walks batch entries sequentially anyway)
    # but avoids 3-D dot_general / transpose relayouts inside the kernel.
    for f in range(fb):
        xf = x_ref[:, f, :].astype(jnp.bfloat16)                       # [Bt, dim]
        h = jnp.dot(xf, w1_ref[f], preferred_element_type=jnp.float32)  # MXU, f32 acc
        h = jnp.maximum(h + b1_ref[f], 0.0)                             # f32 bias+ReLU (VPU)
        o = jnp.dot(h.astype(jnp.bfloat16), w2_ref[f],
                    preferred_element_type=jnp.float32) + b2_ref[f]
        o_ref[f] = o.astype(o_ref.dtype)


# ----------------------------------------------------------------------------
# Parameter init / packing
# ----------------------------------------------------------------------------
def init_sep_mlp_params(key, dim, len_feats, categories, dtype=jnp.float32):
    """Deterministic parameter init mirroring nn.Linear defaults (uniform)."""
    hidden = 5 * dim
    params = []
    for i in range(len_feats):
        k = jax.random.fold_in(key, i)
        k1, k2, k3, k4 = jax.random.split(k, 4)
        bound1 = 1.0 / (dim ** 0.5)
        bound2 = 1.0 / (hidden ** 0.5)
        w1 = jax.random.uniform(k1, (dim, hidden), dtype, -bound1, bound1)
        b1 = jax.random.uniform(k2, (hidden,), dtype, -bound1, bound1)
        w2 = jax.random.uniform(k3, (hidden, categories[i]), dtype, -bound2, bound2)
        b2 = jax.random.uniform(k4, (categories[i],), dtype, -bound2, bound2)
        params.append((w1, b1, w2, b2))
    return params


def pack_sep_mlp_params(params, weight_dtype=jnp.bfloat16, cat_align=8):
    """Stack per-feature params; pad categories only to a small multiple (8 lanes)
    and store the (dominant) weight tensors as bf16 in HBM."""
    F = len(params)
    hidden = params[0][0].shape[1]
    max_cat = max(p[2].shape[1] for p in params)
    catp = max(cat_align, ((max_cat + cat_align - 1) // cat_align) * cat_align)

    w1s = jnp.stack([p[0] for p in params]).astype(weight_dtype)            # [F, dim, hidden]
    b1s = jnp.stack([p[1] for p in params]).reshape(F, 1, hidden)
    b1s = b1s.astype(jnp.float32)                                           # [F, 1, hidden]
    w2s = jnp.stack([jnp.pad(p[2], ((0, 0), (0, catp - p[2].shape[1])))
                     for p in params]).astype(weight_dtype)                 # [F, hidden, catp]
    b2s = jnp.stack([jnp.pad(p[3], (0, catp - p[3].shape[0]))
                     for p in params]).reshape(F, 1, catp).astype(jnp.float32)
    return w1s, b1s, w2s, b2s


# ----------------------------------------------------------------------------
# Block-size selection
# ----------------------------------------------------------------------------
def _pick_feature_block(F, per_feature_bytes, vmem_budget_bytes=8 * 1024 * 1024):
    """Largest divisor of F whose weight block fits the budget, keeping >= 2
    grid steps (when possible) so both v7x TensorCores get work."""
    max_fb = max(1, int(vmem_budget_bytes // max(per_feature_bytes, 1)))
    best = 1
    for d in range(1, F + 1):
        if F % d != 0 or d > max_fb:
            continue
        if F >= 2 and F // d < 2:
            continue
        best = d
    return best


def _pick_batch_tile(B, max_bt=1024):
    """Batch tile: full B when small, otherwise a multiple-of-8 divisor."""
    if B <= max_bt:
        return B
    for bt in range(max_bt - (max_bt % 8), 7, -8):
        if B % bt == 0:
            return bt
    return B


# ----------------------------------------------------------------------------
# Forward wrapper
# ----------------------------------------------------------------------------
def sep_mlp_forward(x, packed_params, categories):
    """x: [B, len_feats, dim] float32.  Returns list of [B, categories[i]]."""
    B, F, dim = x.shape
    w1s, b1s, w2s, b2s = packed_params
    hidden = w1s.shape[-1]
    catp = w2s.shape[-1]
    w_itemsize = jnp.dtype(w1s.dtype).itemsize

    per_feat_bytes = (dim * hidden + hidden * catp) * w_itemsize + (hidden + catp) * 4
    fb = _pick_feature_block(F, per_feat_bytes)
    bt = _pick_batch_tile(B)
    gf = F // fb
    gb = B // bt
    assert F % fb == 0 and B % bt == 0

    # Free axis-split reshape (same memory layout, no HBM pass): the feature
    # group becomes a squeezed leading-ish dim selectable by the BlockSpec.
    x4 = x.reshape(B, gf, fb, dim)

    # VMEM sizing: double-buffered in/out blocks + headroom, capped at v7x's
    # 64 MiB physical VMEM (half of v5e/v6e) so the same tiling runs everywhere.
    block_bytes = (bt * fb * dim * jnp.dtype(x.dtype).itemsize
                   + fb * (dim * hidden + hidden * catp) * w_itemsize
                   + fb * (hidden + catp) * 4
                   + fb * bt * catp * 4)
    vmem_limit = int(min(max(4 * block_bytes + (4 << 20), 32 << 20), 64 << 20))

    out = pl.pallas_call(
        _sep_mlp_kernel,
        out_shape=jax.ShapeDtypeStruct((F, B, catp), x.dtype),
        grid=(gb, gf),
        in_specs=[
            # x: batch-tiled, feature-group selected via the squeezed axis.
            pl.BlockSpec((bt, None, fb, dim), lambda b, g: (b, g, 0, 0)),
            # Grouped per-feature weights/biases (weights bf16 in HBM).
            pl.BlockSpec((fb, dim, hidden), lambda b, g: (g, 0, 0)),
            pl.BlockSpec((fb, 1, hidden), lambda b, g: (g, 0, 0)),
            pl.BlockSpec((fb, hidden, catp), lambda b, g: (g, 0, 0)),
            pl.BlockSpec((fb, 1, catp), lambda b, g: (g, 0, 0)),
        ],
        out_specs=pl.BlockSpec((fb, bt, catp), lambda b, g: (g, b, 0)),
        compiler_params=pltpu.CompilerParams(
            # Both axes are independent: feature groups shard across v7x's 2 TCs.
            dimension_semantics=("parallel", "parallel"),
            vmem_limit_bytes=vmem_limit,
        ),
    )(x4, w1s, b1s, w2s, b2s)

    # Slice real category counts off the small padded slab (layout plumbing).
    return [out[i, :, :categories[i]] for i in range(F)]


# ----------------------------------------------------------------------------
# Reference (mirrors the kernel's bf16-weight / f32-accumulate numerics)
# ----------------------------------------------------------------------------
def sep_mlp_reference(x, params, weight_dtype=jnp.bfloat16):
    outs = []
    for i, (w1, b1, w2, b2) in enumerate(params):
        x_i = x[:, i, :].astype(weight_dtype)
        h = jnp.dot(x_i, w1.astype(weight_dtype),
                    preferred_element_type=jnp.float32) + b1
        h = jnp.maximum(h, 0.0)
        o = jnp.dot(h.astype(weight_dtype), w2.astype(weight_dtype),
                    preferred_element_type=jnp.float32) + b2
        outs.append(o)
    return outs


# ----------------------------------------------------------------------------
# Demo
# ----------------------------------------------------------------------------
if __name__ == "__main__":
    # Small shapes consistent with the module: batch=2, len_feats=4, dim=32,
    # hidden = 5*dim = 160, per-feature category counts vary.
    B, LEN_FEATS, DIM = 2, 4, 32
    CATEGORIES = [3, 5, 7, 4]

    key = jax.random.PRNGKey(0)
    kx, kp = jax.random.split(key)
    x = jax.random.normal(kx, (B, LEN_FEATS, DIM), dtype=jnp.float32)
    params = init_sep_mlp_params(kp, DIM, LEN_FEATS, CATEGORIES)
    packed = pack_sep_mlp_params(params)

    y_pred = sep_mlp_forward(x, packed, CATEGORIES)
    y_pred = [jax.block_until_ready(y) for y in y_pred]

    # Reference mirrors the kernel's bf16-weight precision, so the tolerance
    # stays tight; vs the pure-f32 module the expected delta is ~1e-2 (bf16
    # weight quantization), as accepted in the performance review.
    y_ref = sep_mlp_reference(x, params)
    for i, (yk, yr) in enumerate(zip(y_pred, y_ref)):
        assert yk.shape == (B, CATEGORIES[i]), (yk.shape, (B, CATEGORIES[i]))
        assert jnp.allclose(yk, yr, atol=1e-2, rtol=1e-2), f"mismatch in feature {i}"

    print("KERNEL_OK")
</pallas_src>

<mosaic_0001>
module attributes {stable_mosaic.version = 11 : i64} {
  func.func @_sep_mlp_kernel(%arg0: i32, %arg1: i32, %arg2: memref<2x1x2x32xf32, #tpu.memory_space<vmem>>, %arg3: memref<2x32x160xbf16, #tpu.memory_space<vmem>>, %arg4: memref<2x1x160xf32, #tpu.memory_space<vmem>>, %arg5: memref<2x160x8xbf16, #tpu.memory_space<vmem>>, %arg6: memref<2x1x8xf32, #tpu.memory_space<vmem>>, %arg7: memref<2x2x8xf32, #tpu.memory_space<vmem>>) attributes {dimension_semantics = [#tpu.dimension_semantics<parallel>, #tpu.dimension_semantics<parallel>], iteration_bounds = array<i64: 1, 2>, scalar_prefetch = 0 : i64, scratch_operands = 0 : i64, tpu.core_type = #tpu.core_type<tc>, window_params = [{transform_indices = @transform_0, window_bounds = array<i64: 2, 1, 2, 32>}, {transform_indices = @transform_1, window_bounds = array<i64: 2, 32, 160>}, {transform_indices = @transform_2, window_bounds = array<i64: 2, 1, 160>}, {transform_indices = @transform_3, window_bounds = array<i64: 2, 160, 8>}, {transform_indices = @transform_4, window_bounds = array<i64: 2, 1, 8>}, {transform_indices = @transform_5, window_bounds = array<i64: 2, 2, 8>}]} {
    %c0 = arith.constant 0 : index
    %c0_0 = arith.constant 0 : index
    %c0_1 = arith.constant 0 : index
    %c0_2 = arith.constant 0 : index
    %0 = vector.load %arg2[%c0, %c0_0, %c0_1, %c0_2] : memref<2x1x2x32xf32, #tpu.memory_space<vmem>>, vector<2x1x1x32xf32>
    %1 = vector.shape_cast %0 : vector<2x1x1x32xf32> to vector<2x32xf32>
    %2 = arith.truncf %1 : vector<2x32xf32> to vector<2x32xbf16>
    %c0_3 = arith.constant 0 : index
    %c0_4 = arith.constant 0 : index
    %c0_5 = arith.constant 0 : index
    %3 = vector.load %arg3[%c0_3, %c0_4, %c0_5] : memref<2x32x160xbf16, #tpu.memory_space<vmem>>, vector<1x32x160xbf16>
    %4 = vector.shape_cast %3 : vector<1x32x160xbf16> to vector<32x160xbf16>
    %cst = arith.constant dense<0.000000e+00> : vector<2x160xf32>
    %5 = tpu.matmul %2, %4, %cst {dimension_numbers = #tpu.dot_dimension_numbers<[1], [0], [0], [1], [0, 0, 1, 1], [], []>} : vector<2x32xbf16>, vector<32x160xbf16>, vector<2x160xf32> -> vector<2x160xf32>
    %c0_6 = arith.constant 0 : index
    %c0_7 = arith.constant 0 : index
    %c0_8 = arith.constant 0 : index
    %6 = vector.load %arg4[%c0_6, %c0_7, %c0_8] : memref<2x1x160xf32, #tpu.memory_space<vmem>>, vector<1x1x160xf32>
    %7 = vector.shape_cast %6 : vector<1x1x160xf32> to vector<1x160xf32>
    %8 = vector.broadcast %7 : vector<1x160xf32> to vector<2x160xf32>
    %9 = arith.addf %5, %8 : vector<2x160xf32>
    %cst_9 = arith.constant 0.000000e+00 : f32
    %10 = vector.broadcast %cst_9 : f32 to vector<2x160xf32>
    %11 = arith.maximumf %9, %10 : vector<2x160xf32>
    %12 = arith.truncf %11 : vector<2x160xf32> to vector<2x160xbf16>
    %c0_10 = arith.constant 0 : index
    %c0_11 = arith.constant 0 : index
    %c0_12 = arith.constant 0 : index
    %13 = vector.load %arg5[%c0_10, %c0_11, %c0_12] : memref<2x160x8xbf16, #tpu.memory_space<vmem>>, vector<1x160x8xbf16>
    %14 = vector.shape_cast %13 : vector<1x160x8xbf16> to vector<160x8xbf16>
    %cst_13 = arith.constant dense<0.000000e+00> : vector<2x8xf32>
    %15 = tpu.matmul %12, %14, %cst_13 {dimension_numbers = #tpu.dot_dimension_numbers<[1], [0], [0], [1], [0, 0, 1, 1], [], []>} : vector<2x160xbf16>, vector<160x8xbf16>, vector<2x8xf32> -> vector<2x8xf32>
    %c0_14 = arith.constant 0 : index
    %c0_15 = arith.constant 0 : index
    %c0_16 = arith.constant 0 : index
    %16 = vector.load %arg6[%c0_14, %c0_15, %c0_16] : memref<2x1x8xf32, #tpu.memory_space<vmem>>, vector<1x1x8xf32>
    %17 = vector.shape_cast %16 : vector<1x1x8xf32> to vector<1x8xf32>
    %18 = vector.broadcast %17 : vector<1x8xf32> to vector<2x8xf32>
    %19 = arith.addf %15, %18 : vector<2x8xf32>
    %c0_17 = arith.constant 0 : index
    %c0_18 = arith.constant 0 : index
    %c0_19 = arith.constant 0 : index
    %20 = vector.load %arg7[%c0_17, %c0_18, %c0_19] : memref<2x2x8xf32, #tpu.memory_space<vmem>>, vector<1x2x8xf32>
    %21 = vector.shape_cast %20 : vector<1x2x8xf32> to vector<2x8xf32>
    %22 = vector.shape_cast %19 : vector<2x8xf32> to vector<1x2x8xf32>
    tpu.vector_store %arg7[%c0_17, %c0_18, %c0_19], %22 {strides = array<i32>} : memref<2x2x8xf32, #tpu.memory_space<vmem>>, vector<1x2x8xf32>,
    %c0_20 = arith.constant 0 : index
    %c0_21 = arith.constant 0 : index
    %c1 = arith.constant 1 : index
    %c0_22 = arith.constant 0 : index
    %23 = vector.load %arg2[%c0_20, %c0_21, %c1, %c0_22] : memref<2x1x2x32xf32, #tpu.memory_space<vmem>>, vector<2x1x1x32xf32>
    %24 = vector.shape_cast %23 : vector<2x1x1x32xf32> to vector<2x32xf32>
    %25 = arith.truncf %24 : vector<2x32xf32> to vector<2x32xbf16>
    %c1_23 = arith.constant 1 : index
    %c0_24 = arith.constant 0 : index
    %c0_25 = arith.constant 0 : index
    %26 = vector.load %arg3[%c1_23, %c0_24, %c0_25] : memref<2x32x160xbf16, #tpu.memory_space<vmem>>, vector<1x32x160xbf16>
    %27 = vector.shape_cast %26 : vector<1x32x160xbf16> to vector<32x160xbf16>
    %cst_26 = arith.constant dense<0.000000e+00> : vector<2x160xf32>
    %28 = tpu.matmul %25, %27, %cst_26 {dimension_numbers = #tpu.dot_dimension_numbers<[1], [0], [0], [1], [0, 0, 1, 1], [], []>} : vector<2x32xbf16>, vector<32x160xbf16>, vector<2x160xf32> -> vector<2x160xf32>
    %c1_27 = arith.constant 1 : index
    %c0_28 = arith.constant 0 : index
    %c0_29 = arith.constant 0 : index
    %29 = vector.load %arg4[%c1_27, %c0_28, %c0_29] : memref<2x1x160xf32, #tpu.memory_space<vmem>>, vector<1x1x160xf32>
    %30 = vector.shape_cast %29 : vector<1x1x160xf32> to vector<1x160xf32>
    %31 = vector.broadcast %30 : vector<1x160xf32> to vector<2x160xf32>
    %32 = arith.addf %28, %31 : vector<2x160xf32>
    %cst_30 = arith.constant 0.000000e+00 : f32
    %33 = vector.broadcast %cst_30 : f32 to vector<2x160xf32>
    %34 = arith.maximumf %32, %33 : vector<2x160xf32>
    %35 = arith.truncf %34 : vector<2x160xf32> to vector<2x160xbf16>
    %c1_31 = arith.constant 1 : index
    %c0_32 = arith.constant 0 : index
    %c0_33 = arith.constant 0 : index
    %36 = vector.load %arg5[%c1_31, %c0_32, %c0_33] : memref<2x160x8xbf16, #tpu.memory_space<vmem>>, vector<1x160x8xbf16>
    %37 = vector.shape_cast %36 : vector<1x160x8xbf16> to vector<160x8xbf16>
    %cst_34 = arith.constant dense<0.000000e+00> : vector<2x8xf32>
    %38 = tpu.matmul %35, %37, %cst_34 {dimension_numbers = #tpu.dot_dimension_numbers<[1], [0], [0], [1], [0, 0, 1, 1], [], []>} : vector<2x160xbf16>, vector<160x8xbf16>, vector<2x8xf32> -> vector<2x8xf32>
    %c1_35 = arith.constant 1 : index
    %c0_36 = arith.constant 0 : index
    %c0_37 = arith.constant 0 : index
    %39 = vector.load %arg6[%c1_35, %c0_36, %c0_37] : memref<2x1x8xf32, #tpu.memory_space<vmem>>, vector<1x1x8xf32>
    %40 = vector.shape_cast %39 : vector<1x1x8xf32> to vector<1x8xf32>
    %41 = vector.broadcast %40 : vector<1x8xf32> to vector<2x8xf32>
    %42 = arith.addf %38, %41 : vector<2x8xf32>
    %c1_38 = arith.constant 1 : index
    %c0_39 = arith.constant 0 : index
    %c0_40 = arith.constant 0 : index
    %43 = vector.load %arg7[%c1_38, %c0_39, %c0_40] : memref<2x2x8xf32, #tpu.memory_space<vmem>>, vector<1x2x8xf32>
    %44 = vector.shape_cast %43 : vector<1x2x8xf32> to vector<2x8xf32>
    %45 = vector.shape_cast %42 : vector<2x8xf32> to vector<1x2x8xf32>
    tpu.vector_store %arg7[%c1_38, %c0_39, %c0_40], %45 {strides = array<i32>} : memref<2x2x8xf32, #tpu.memory_space<vmem>>, vector<1x2x8xf32>,
    return
  }
  func.func @transform_0(%arg0: i32, %arg1: i32) -> (i32, i32, i32, i32) {
    %c0_i32 = arith.constant 0 : i32
    %c0_i32_0 = arith.constant 0 : i32
    %c0_i32_1 = arith.constant 0 : i32
    return %arg0, %arg1, %c0_i32, %c0_i32_0 : i32, i32, i32, i32
  }
  func.func @transform_1(%arg0: i32, %arg1: i32) -> (i32, i32, i32) {
    %c0_i32 = arith.constant 0 : i32
    %c0_i32_0 = arith.constant 0 : i32
    %c0_i32_1 = arith.constant 0 : i32
    return %arg1, %c0_i32, %c0_i32_0 : i32, i32, i32
  }
  func.func @transform_2(%arg0: i32, %arg1: i32) -> (i32, i32, i32) {
    %c0_i32 = arith.constant 0 : i32
    %c0_i32_0 = arith.constant 0 : i32
    %c0_i32_1 = arith.constant 0 : i32
    return %arg1, %c0_i32, %c0_i32_0 : i32, i32, i32
  }
  func.func @transform_3(%arg0: i32, %arg1: i32) -> (i32, i32, i32) {
    %c0_i32 = arith.constant 0 : i32
    %c0_i32_0 = arith.constant 0 : i32
    %c0_i32_1 = arith.constant 0 : i32
    return %arg1, %c0_i32, %c0_i32_0 : i32, i32, i32
  }
  func.func @transform_4(%arg0: i32, %arg1: i32) -> (i32, i32, i32) {
    %c0_i32 = arith.constant 0 : i32
    %c0_i32_0 = arith.constant 0 : i32
    %c0_i32_1 = arith.constant 0 : i32
    return %arg1, %c0_i32, %c0_i32_0 : i32, i32, i32
  }
  func.func @transform_5(%arg0: i32, %arg1: i32) -> (i32, i32, i32) {
    %c0_i32 = arith.constant 0 : i32
    %c0_i32_0 = arith.constant 0 : i32
    return %arg1, %arg0, %c0_i32 : i32, i32, i32
  }
}

</mosaic_0001>

<llo_original>
// kernel: tpu_custom_call.1
$region0: #{tpu_custom_call.1}
  #allocation0 [shape = 'u32[]', space=smem, size = 0x4, offset = 0x4, fixed_abs, tag = 'smem constant byte address 0x4 - core index']
  #allocation1 [shape = 'u32[144,128]{1,0:T(1,128)}', space=vmem, size = 0x12000, scoped, tag = 'internal scratch']
  %s0 = inlined_call_operand.vmem [shape: f32[2,2,2,32], index: 0, kind: input, shape index: {}]
  %s1 = inlined_call_operand.vmem [shape: bf16[4,32,160], index: 1, kind: input, shape index: {}]
  %s2 = inlined_call_operand.vmem [shape: f32[4,1,160], index: 2, kind: input, shape index: {}]
  %s3 = inlined_call_operand.vmem [shape: bf16[4,160,8], index: 3, kind: input, shape index: {}]
  %s4 = inlined_call_operand.vmem [shape: f32[4,1,8], index: 4, kind: input, shape index: {}]
  %s5 = inlined_call_operand.hbm [shape: f32[4,2,8], index: 5, kind: output, shape index: {}]
  %s6 = sld [smem:[#allocation0]]
  $region87: #{tpu_custom_call.1} parent=0
    _
  %s8 = ssub.s32 1, %s6
  %s9 = scalar_select 0, %s8, %s6
  $region1: #{tpu_custom_call.1} parent=0
    #allocation2 [shape = 'u8[4096]{0}', space=vmem, size = 0x1000, scoped, tag = 'input window, operand 0']
    #allocation3 [shape = 'u8[4096]{0}', space=vmem, size = 0x1000, scoped, tag = 'output window, operand 0']
    #allocation4 [shape = 's32[2]{0}', space=sflag, size = 0x8, scoped, tag = 'scoped memory for tpu_custom_call.1']
    %10 = vsyncpa [#allocation4], 0
    %s11 = scalar_lea.sflag [#allocation4], 1
    %12 = vsyncpa %s11, 0
    loop: start=0, step=1, limit=4
    $region2: #{tpu_custom_call.1} parent=1 // loop_pre_header
      _
    $region3: #{tpu_custom_call.1} parent=1 // loop_header
      %s14 = sphi 0, %s18
      %p15 = scmp.ge.s32.totalorder %s14, 4
      %s21 = sphi 0, %s33
      %s22 = sphi 0, %s29
      %s23 = sphi 0, %s21
      %s24 = sphi 0, %s22
      %s25 = sphi 0, %s23
      %s26 = sphi 0, %s24
      %s38 = sphi 0, %s40
      %s41 = sphi 0, %s38
      %s42 = sphi 0, %s41
      %s58 = sphi 0, %s42
      %s64 = sphi 0, %s66
      %s67 = sphi 0, %s64
      %s68 = sphi 0, %s67
      %s84 = sphi 0, %s68
      %s90 = sphi 0, %s92
      %s93 = sphi 0, %s90
      %s94 = sphi 0, %s93
      %s110 = sphi 0, %s94
      %s116 = sphi 0, %s118
      %s119 = sphi 0, %s116
      %s120 = sphi 0, %s119
      %s136 = sphi 0, %s120
      %s142 = sphi 0, %s144
      %s145 = sphi 0, %s142
      %s146 = sphi 0, %s145
      %s162 = sphi 0, %s146
      %s170 = sphi 0, %s172
      %s173 = sphi 0, %s170
      %s174 = sphi 0, %s173
      %s190 = sphi 0, %s174
    $region4: #{tpu_custom_call.1} parent=1 // loop_header_branch
      %17 = sbr.rel (%p15) target = $region8
    $region5: #{tpu_custom_call.1} parent=1 // loop_body
      %s19 = ssub.s32 %s14, 1
      %s20 = ssub.s32 %s14, 2
      %s27 = sadd.s32 1, %s22
      %p28 = scmp.ge.s32.totalorder %s27, 2
      %s29 = scalar_select %p28, 0, %s27
      %s30 = sadd.s32 1, %s21
      %s31 = scalar_select %p28, %s30, %s21
      %p32 = scmp.ge.s32.totalorder %s31, 1
      %s33 = scalar_select %p32, 0, %s31
      %s34 = ssub.s32 %s21, %s33
      %s35 = ssub.s32 %s22, %s29
      %s36 = sor.u32 %s34, %s35
      %p37 = scmp.eq.s32.totalorder %s36, 0
      %s39 = sadd.s32 %s38, 1
      %s40 = scalar_select %p37, %s38, %s39
      %p43 = pneg %p37
      %p44 = scmp.eq.s32.totalorder %s14, 1
      %p45 = por %p43, %p44
      %p46 = scmp.ne.s32.totalorder %s38, %s41
      %p47 = scmp.eq.s32.totalorder %s14, 0
      %p48 = por %p46, %p47
      %p49 = scmp.ne.s32.totalorder %s38, %s41
      %p50 = scmp.eq.s32.totalorder %s19, 1
      %p51 = por %p49, %p50
      %p52 = scmp.ne.s32.totalorder %s41, %s42
      %p53 = scmp.eq.s32.totalorder %s19, 0
      %p54 = por %p52, %p53
      %p55 = scmp.ne.s32.totalorder %s41, %s42
      %p56 = scmp.eq.s32.totalorder %s20, 1
      %p57 = por %p55, %p56
      %p59 = scmp.ne.s32.totalorder %s42, %s58
      %p60 = scmp.eq.s32.totalorder %s20, 0
      %p61 = por %p59, %p60
      %s62 = ssub.s32 %s22, %s29
      %p63 = scmp.eq.s32.totalorder %s62, 0
      %s65 = sadd.s32 %s64, 1
      %s66 = scalar_select %p63, %s64, %s65
      %p69 = pneg %p63
      %p70 = scmp.eq.s32.totalorder %s14, 1
      %p71 = por %p69, %p70
      %p72 = scmp.ne.s32.totalorder %s64, %s67
      %p73 = scmp.eq.s32.totalorder %s14, 0
      %p74 = por %p72, %p73
      %p75 = scmp.ne.s32.totalorder %s64, %s67
      %p76 = scmp.eq.s32.totalorder %s19, 1
      %p77 = por %p75, %p76
      %p78 = scmp.ne.s32.totalorder %s67, %s68
      %p79 = scmp.eq.s32.totalorder %s19, 0
      %p80 = por %p78, %p79
      %p81 = scmp.ne.s32.totalorder %s67, %s68
      %p82 = scmp.eq.s32.totalorder %s20, 1
      %p83 = por %p81, %p82
      %p85 = scmp.ne.s32.totalorder %s68, %s84
      %p86 = scmp.eq.s32.totalorder %s20, 0
      %p87 = por %p85, %p86
      %s88 = ssub.s32 %s22, %s29
      %p89 = scmp.eq.s32.totalorder %s88, 0
      %s91 = sadd.s32 %s90, 1
      %s92 = scalar_select %p89, %s90, %s91
      %p95 = pneg %p89
      %p96 = scmp.eq.s32.totalorder %s14, 1
      %p97 = por %p95, %p96
      %p98 = scmp.ne.s32.totalorder %s90, %s93
      %p99 = scmp.eq.s32.totalorder %s14, 0
      %p100 = por %p98, %p99
      %p101 = scmp.ne.s32.totalorder %s90, %s93
      %p102 = scmp.eq.s32.totalorder %s19, 1
      %p103 = por %p101, %p102
      %p104 = scmp.ne.s32.totalorder %s93, %s94
      %p105 = scmp.eq.s32.totalorder %s19, 0
      %p106 = por %p104, %p105
      %p107 = scmp.ne.s32.totalorder %s93, %s94
      %p108 = scmp.eq.s32.totalorder %s20, 1
      %p109 = por %p107, %p108
      %p111 = scmp.ne.s32.totalorder %s94, %s110
      %p112 = scmp.eq.s32.totalorder %s20, 0
      %p113 = por %p111, %p112
      %s114 = ssub.s32 %s22, %s29
      %p115 = scmp.eq.s32.totalorder %s114, 0
      %s117 = sadd.s32 %s116, 1
      %s118 = scalar_select %p115, %s116, %s117
      %p121 = pneg %p115
      %p122 = scmp.eq.s32.totalorder %s14, 1
      %p123 = por %p121, %p122
      %p124 = scmp.ne.s32.totalorder %s116, %s119
      %p125 = scmp.eq.s32.totalorder %s14, 0
      %p126 = por %p124, %p125
      %p127 = scmp.ne.s32.totalorder %s116, %s119
      %p128 = scmp.eq.s32.totalorder %s19, 1
      %p129 = por %p127, %p128
      %p130 = scmp.ne.s32.totalorder %s119, %s120
      %p131 = scmp.eq.s32.totalorder %s19, 0
      %p132 = por %p130, %p131
      %p133 = scmp.ne.s32.totalorder %s119, %s120
      %p134 = scmp.eq.s32.totalorder %s20, 1
      %p135 = por %p133, %p134
      %p137 = scmp.ne.s32.totalorder %s120, %s136
      %p138 = scmp.eq.s32.totalorder %s20, 0
      %p139 = por %p137, %p138
      %s140 = ssub.s32 %s22, %s29
      %p141 = scmp.eq.s32.totalorder %s140, 0
      %s143 = sadd.s32 %s142, 1
      %s144 = scalar_select %p141, %s142, %s143
      %p147 = pneg %p141
      %p148 = scmp.eq.s32.totalorder %s14, 1
      %p149 = por %p147, %p148
      %p150 = scmp.ne.s32.totalorder %s142, %s145
      %p151 = scmp.eq.s32.totalorder %s14, 0
      %p152 = por %p150, %p151
      %p153 = scmp.ne.s32.totalorder %s142, %s145
      %p154 = scmp.eq.s32.totalorder %s19, 1
      %p155 = por %p153, %p154
      %p156 = scmp.ne.s32.totalorder %s145, %s146
      %p157 = scmp.eq.s32.totalorder %s19, 0
      %p158 = por %p156, %p157
      %p159 = scmp.ne.s32.totalorder %s145, %s146
      %p160 = scmp.eq.s32.totalorder %s20, 1
      %p161 = por %p159, %p160
      %p163 = scmp.ne.s32.totalorder %s146, %s162
      %p164 = scmp.eq.s32.totalorder %s20, 0
      %p165 = por %p163, %p164
      %s166 = ssub.s32 %s22, %s29
      %s167 = ssub.s32 %s21, %s33
      %s168 = sor.u32 %s166, %s167
      %p169 = scmp.eq.s32.totalorder %s168, 0
      %s171 = sadd.s32 %s170, 1
      %s172 = scalar_select %p169, %s170, %s171
      %p175 = pneg %p169
      %p176 = scmp.eq.s32.totalorder %s14, 1
      %p177 = por %p175, %p176
      %p178 = scmp.ne.s32.totalorder %s170, %s173
      %p179 = scmp.eq.s32.totalorder %s14, 0
      %p180 = por %p178, %p179
      %p181 = scmp.ne.s32.totalorder %s170, %s173
      %p182 = scmp.eq.s32.totalorder %s19, 1
      %p183 = por %p181, %p182
      %p184 = scmp.ne.s32.totalorder %s173, %s174
      %p185 = scmp.eq.s32.totalorder %s19, 0
      %p186 = por %p184, %p185
      %p187 = scmp.ne.s32.totalorder %s173, %s174
      %p188 = scmp.eq.s32.totalorder %s20, 1
      %p189 = por %p187, %p188
      %p191 = scmp.ne.s32.totalorder %s174, %s190
      %p192 = scmp.eq.s32.totalorder %s20, 0
      %p193 = por %p191, %p192
      %p194 = scmp.le.s32.totalorder 1, %s14
      %p195 = scmp.lt.s32.totalorder %s14, 3
      %p196 = pnand %p194, %p195
      %p197 = pneg %p196
      // Predicated region
      $region9: #{tpu_custom_call.1} parent=5 // pred_check
        _
      $region10: #{tpu_custom_call.1} parent=5 // pred_check_branch
        %199 = sbr.rel (%p196) target = $region12
      $region11: #{tpu_custom_call.1} parent=5 // pred_region
        %s200 = ssub.s32 %s14, 1
      $region12: #{tpu_custom_call.1} parent=5 // pred_fallthru
        _
      %p201 = scmp.lt.s32.totalorder %s14, 2
      // Predicated region
      $region13: #{tpu_custom_call.1} parent=5 // pred_check
        %p202 = pneg %p201
      $region14: #{tpu_custom_call.1} parent=5 // pred_check_branch
        %204 = sbr.rel (%p202) target = $region16
      $region15: #{tpu_custom_call.1} parent=5 // pred_region
        // Predicated region
        $region17: #{tpu_custom_call.1} parent=15 // pred_check
          %p205 = pneg %p48
        $region18: #{tpu_custom_call.1} parent=15 // pred_check_branch
          %207 = sbr.rel (%p205) target = $region20
        $region19: #{tpu_custom_call.1} parent=15 // pred_region
          %s208 = sand.u32 %s38, 1
          %s209 = sand.u32 %s38, 1
          %s210 = smul.addr %s209, 4
          %s211 = scalar_lea.vmem [#allocation2], %s210
          %s212 = smul.u32 2, %s21
          %s213 = smul.addr %s212, 2
          %s214 = sadd.s32 %s22, %s213
          %s215 = smul.addr %s214, 2
          %s216 = scalar_lea.vmem %s0, %s215
          // Predicated region
          $region21: #{tpu_custom_call.1} parent=19 // pred_check
            _
          $region22: #{tpu_custom_call.1} parent=19 // pred_check_branch
            %218 = sbr.rel (0) target = $region24
          $region23: #{tpu_custom_call.1} parent=19 // pred_region
            // Predicated region
            $region25: #{tpu_custom_call.1} parent=23 // pred_check
              _
            $region26: #{tpu_custom_call.1} parent=23 // pred_check_branch
              %220 = sbr.rel target = $region28
            $region27: #{tpu_custom_call.1} parent=23 // pred_region
              // Predicated region
              $region40: #{tpu_custom_call.1} parent=27 // pred_check
                _
              $region41: #{tpu_custom_call.1} parent=27 // pred_check_branch
                %238 = sbr.rel (0) target = $region43
              $region42: #{tpu_custom_call.1} parent=27 // pred_region
                %s240 = ssub.s32 4, 1
                loop: start=0, step=1, limit=1
                $region44: #{tpu_custom_call.1} parent=42 // loop_pre_header
                  _
                $region45: #{tpu_custom_call.1} parent=42 // loop_header
                  %s242 = sphi 0, %s246
                  %p243 = scmp.ge.s32.totalorder %s242, 1
                  %s247 = sphi %s216, %s216
                  %s248 = sphi %s211, %s211
                $region46: #{tpu_custom_call.1} parent=42 // loop_header_branch
                  %245 = sbr.rel (%p243) target = $region50
                $region47: #{tpu_custom_call.1} parent=42 // loop_body
                  %v249 = vld [vmem:[%s247] sm:%s240]
                  %250 = vst [vmem:[%s248] sm:%s240] %v249
                  %v251 = vld [vmem:[%s247 + $0x4] sm:%s240]
                  %252 = vst [vmem:[%s248 + $0x2] sm:%s240] %v251
                $region48: #{tpu_custom_call.1} parent=42 // loop_footer
                  %s246 = sadd.s32 1, %s242
                $region49: #{tpu_custom_call.1} parent=42 // loop_footer_branch
                  %241 = sbr.rel target = $region45
                $region50: #{tpu_custom_call.1} parent=42 // loop_exit
                  _
              $region43: #{tpu_custom_call.1} parent=27 // pred_fallthru
                _
            $region28: #{tpu_custom_call.1} parent=23 // pred_fallthru
              _
            // Predicated region
            $region29: #{tpu_custom_call.1} parent=23 // pred_check
              _
            $region30: #{tpu_custom_call.1} parent=23 // pred_check_branch
              %222 = sbr.rel (0) target = $region32
            $region31: #{tpu_custom_call.1} parent=23 // pred_region
              %s224 = ssub.s32 4, 1
              loop: start=0, step=1, limit=1
              $region33: #{tpu_custom_call.1} parent=31 // loop_pre_header
                _
              $region34: #{tpu_custom_call.1} parent=31 // loop_header
                %s226 = sphi 0, %s230
                %p227 = scmp.ge.s32.totalorder %s226, 1
                %s231 = sphi %s216, %s216
                %s232 = sphi %s211, %s211
              $region35: #{tpu_custom_call.1} parent=31 // loop_header_branch
                %229 = sbr.rel (%p227) target = $region39
              $region36: #{tpu_custom_call.1} parent=31 // loop_body
                %v233 = vld [vmem:[%s231] sm:%s224]
                %234 = vst [vmem:[%s232] sm:%s224] %v233
                %v235 = vld [vmem:[%s231 + $0x4] sm:%s224]
                %236 = vst [vmem:[%s232 + $0x2] sm:%s224] %v235
              $region37: #{tpu_custom_call.1} parent=31 // loop_footer
                %s230 = sadd.s32 1, %s226
              $region38: #{tpu_custom_call.1} parent=31 // loop_footer_branch
                %225 = sbr.rel target = $region34
              $region39: #{tpu_custom_call.1} parent=31 // loop_exit
                _
            $region32: #{tpu_custom_call.1} parent=23 // pred_fallthru
              _
          $region24: #{tpu_custom_call.1} parent=19 // pred_fallthru
            _
          %253 = vnop
        $region20: #{tpu_custom_call.1} parent=15 // pred_fallthru
          _
        // Predicated region
        $region51: #{tpu_custom_call.1} parent=15 // pred_check
          %p254 = pneg %p74
        $region52: #{tpu_custom_call.1} parent=15 // pred_check_branch
          %256 = sbr.rel (%p254) target = $region54
        $region53: #{tpu_custom_call.1} parent=15 // pred_region
          %s257 = smul.u32 2, %s22
          %p258 = scmp.lt.s32.totalorder %s257, 3
          %s259 = scalar_select %p258, %s257, 3
          %s260 = smul.addr %s259, 8
          %s261 = smul.addr %s260, 4
          %s262 = scalar_lea.vmem %s1, %s261
          %s263 = smul.u32 2, %s22
        $region54: #{tpu_custom_call.1} parent=15 // pred_fallthru
          _
        // Predicated region
        $region55: #{tpu_custom_call.1} parent=15 // pred_check
          %p264 = pneg %p100
        $region56: #{tpu_custom_call.1} parent=15 // pred_check_branch
          %266 = sbr.rel (%p264) target = $region58
        $region57: #{tpu_custom_call.1} parent=15 // pred_region
          %s267 = smul.u32 2, %s22
          %p268 = scmp.lt.s32.totalorder %s267, 3
          %s269 = scalar_select %p268, %s267, 3
          %s270 = smul.addr %s269, 2
          %s271 = scalar_lea.vmem %s2, %s270
          %s272 = smul.u32 2, %s22
        $region58: #{tpu_custom_call.1} parent=15 // pred_fallthru
          _
        // Predicated region
        $region59: #{tpu_custom_call.1} parent=15 // pred_check
          %p273 = pneg %p126
        $region60: #{tpu_custom_call.1} parent=15 // pred_check_branch
          %275 = sbr.rel (%p273) target = $region62
        $region61: #{tpu_custom_call.1} parent=15 // pred_region
          %s276 = smul.u32 2, %s22
          %p277 = scmp.lt.s32.totalorder %s276, 3
          %s278 = scalar_select %p277, %s276, 3
          %s279 = smul.addr %s278, 20
          %s280 = smul.addr %s279, 4
          %s281 = scalar_lea.vmem %s3, %s280
          %s282 = smul.u32 2, %s22
        $region62: #{tpu_custom_call.1} parent=15 // pred_fallthru
          _
        // Predicated region
        $region63: #{tpu_custom_call.1} parent=15 // pred_check
          %p283 = pneg %p152
        $region64: #{tpu_custom_call.1} parent=15 // pred_check_branch
          %285 = sbr.rel (%p283) target = $region66
        $region65: #{tpu_custom_call.1} parent=15 // pred_region
          %s286 = smul.u32 2, %s22
          %p287 = scmp.lt.s32.totalorder %s286, 3
          %s288 = scalar_select %p287, %s286, 3
          %s289 = scalar_lea.vmem %s4, %s288
          %s290 = smul.u32 2, %s22
        $region66: #{tpu_custom_call.1} parent=15 // pred_fallthru
          _
      $region16: #{tpu_custom_call.1} parent=5 // pred_fallthru
        _
      %p291 = scmp.le.s32.totalorder 1, %s14
      %p292 = scmp.lt.s32.totalorder %s14, 3
      %p293 = pnand %p291, %p292
      %p294 = pneg %p293
      // Predicated region
      $region67: #{tpu_custom_call.1} parent=5 // pred_check
        _
      $region68: #{tpu_custom_call.1} parent=5 // pred_check_branch
        %296 = sbr.rel (%p293) target = $region70
      $region69: #{tpu_custom_call.1} parent=5 // pred_region
        %s297 = ssub.s32 %s14, 1
        %s298 = sand.u32 %s41, 1
        %s299 = sand.u32 %s41, 1
        %s300 = smul.addr %s299, 4
        %s301 = scalar_lea.vmem [#allocation2], %s300
        // Predicated region
        $region71: #{tpu_custom_call.1} parent=69 // pred_check
          %p302 = pneg %p54
        $region72: #{tpu_custom_call.1} parent=69 // pred_check_branch
          %304 = sbr.rel (%p302) target = $region74
        $region73: #{tpu_custom_call.1} parent=69 // pred_region
          _
        $region74: #{tpu_custom_call.1} parent=69 // pred_fallthru
          _
        %s305 = sand.u32 %s41, 1
        %s306 = sand.u32 %s41, 1
        %s307 = smul.addr %s306, 4
        %s308 = scalar_lea.vmem [#allocation2], %s307
        %p309 = pneg %p54
        %p310 = pneg %p51
        %s311 = smul.u32 2, %s24
        %p312 = scmp.lt.s32.totalorder %s311, 3
        %s313 = scalar_select %p312, %s311, 3
        %s314 = smul.addr %s313, 8
        %s315 = smul.addr %s314, 4
        %s316 = scalar_lea.vmem %s1, %s315
        %p317 = pneg %p80
        %p318 = pneg %p77
        %s319 = smul.u32 2, %s24
        %p320 = scmp.lt.s32.totalorder %s319, 3
        %s321 = scalar_select %p320, %s319, 3
        %s322 = smul.addr %s321, 2
        %s323 = scalar_lea.vmem %s2, %s322
        %p324 = pneg %p106
        %p325 = pneg %p103
        %s326 = smul.u32 2, %s24
        %p327 = scmp.lt.s32.totalorder %s326, 3
        %s328 = scalar_select %p327, %s326, 3
        %s329 = smul.addr %s328, 20
        %s330 = smul.addr %s329, 4
        %s331 = scalar_lea.vmem %s3, %s330
        %p332 = pneg %p132
        %p333 = pneg %p129
        %s334 = smul.u32 2, %s24
        %p335 = scmp.lt.s32.totalorder %s334, 3
        %s336 = scalar_select %p335, %s334, 3
        %s337 = scalar_lea.vmem %s4, %s336
        %p338 = pneg %p158
        %p339 = pneg %p155
        %p340 = pneg %p186
        %p341 = pneg %p183
        %s342 = sand.u32 %s173, 1
        %s343 = scalar_lea.sflag [#allocation4], %s342
        %s344 = sand.u32 %s173, 1
        %s345 = smul.addr %s344, 4
        %s346 = scalar_lea.vmem [#allocation3], %s345
        %s347 = smul.u32 2, %s23
        %s348 = smul.u32 2, %s24
        %p349 = scmp.lt.s32.totalorder %s348, 3
        %s350 = scalar_select %p349, %s348, 3
        %s351 = smul.addr %s350, 8
        %s352 = smul.addr %s351, 4
        %s353 = scalar_lea.vmem %s1, %s352
        %s354 = smul.u32 2, %s24
        %s355 = smul.u32 2, %s24
        %p356 = scmp.lt.s32.totalorder %s355, 3
        %s357 = scalar_select %p356, %s355, 3
        %s358 = smul.addr %s357, 2
        %s359 = scalar_lea.vmem %s2, %s358
        %s360 = smul.u32 2, %s24
        %s361 = smul.u32 2, %s24
        %p362 = scmp.lt.s32.totalorder %s361, 3
        %s363 = scalar_select %p362, %s361, 3
        %s364 = smul.addr %s363, 20
        %s365 = smul.addr %s364, 4
        %s366 = scalar_lea.vmem %s3, %s365
        %s367 = smul.u32 2, %s24
        %s368 = smul.u32 2, %s24
        %p369 = scmp.lt.s32.totalorder %s368, 3
        %s370 = scalar_select %p369, %s368, 3
        %s371 = scalar_lea.vmem %s4, %s370
        %s372 = smul.u32 2, %s24
        %s373 = smul.u32 2, %s24
        %v375 = vld [vmem:[%s301] sm:$0x1]
        %v376 = vld [vmem:[%s301 + $0x2] sm:$0x1]
        %v377 = vpack.c.bf16 %v375, %v375
        %v378 = vpack.c.bf16 %v376, %v376
        %v379 = vld [vmem:[%s353] sm:$0xff]
        %v380 = vld [vmem:[%s353 + $0x8] sm:$0xff]
        %v381 = vld [vmem:[%s353 + $0x10] sm:$0xff]
        %v382 = vld [vmem:[%s353 + $0x18] sm:$0xff]
        %v383 = vld [vmem:[%s359] sm:$0x3]
        %v385 = vlaneseq
        %v386 = vshrl.u32 %v385, 7
        %v387 = vsub.s32 0, %v386
        %v388 = vrot.slane %v383, %v387
        %v389 = vlaneseq
        %v390 = vshrl.u32 %v389, 7
        %v391 = vsub.s32 1, %v390
        %v392 = vrot.slane %v383, %v391
        %v397 = vunpack.c.l.b16 %v377
        %v398 = vunpack.c.l.b16 %v378
        %v399 = vrot.slane %v398, 7
        %vm400 = vcmask 1041409
        %v401 = vsel %vm400, %v399, %v397
        %v402 = vpack.c.b16 %v401, %v401
        %v407 = vunpack.c.l.b16 %v379
        %v408 = vunpack.c.h.b16 %v379
        %v409 = vunpack.c.l.b16 %v380
        %v410 = vunpack.c.h.b16 %v380
        %v411 = vunpack.c.l.b16 %v381
        %v412 = vunpack.c.h.b16 %v381
        %v413 = vunpack.c.l.b16 %v382
        %v414 = vunpack.c.h.b16 %v382
        %v415 = vpack.c.b16 %v409, %v407
        %v416 = vpack.c.b16 %v410, %v408
        %v417 = vpack.c.b16 %v413, %v411
        %v418 = vpack.c.b16 %v414, %v412
        %vm423 = vcmask 261120
        %v425 = vsel %vm423, %v402, 0
        %427 = vmatprep.subr.bf16.mxu0 0
        %428 = vmatpush1.bf16.msra.mxu0 0
        %429 = vmatprep.subr.bf16.mxu0 0
        %430 = vmatpush1.bf16.msra.mxu0 0
        %431 = vmatprep.subr.bf16.mxu0 0
        %432 = vmatpush1.bf16.msra.mxu0 0
        %433 = vmatprep.subr.bf16.mxu0 0
        %434 = vmatpush1.bf16.msra.mxu0 0
        %435 = vmatprep.subr.bf16.mxu0 0
        %436 = vmatpush1.bf16.msra.mxu0 0
        %437 = vmatprep.subr.bf16.mxu0 0
        %438 = vmatpush1.bf16.msra.mxu0 0
        %439 = vmatprep.subr.bf16.mxu0 %v418
        %440 = vmatpush1.bf16.msra.mxu0 %v417
        %441 = vmatprep.subr.bf16.mxu0 %v416
        %442 = vmatpush1.bf16.msra.mxu0 %v415
        %443 = vmatprep.subr.bf16.mxu0 0
        %444 = vmatpush2.bf16.msra.mxu0 0
        %445 = vmatprep.subr.bf16.mxu0 0
        %446 = vmatpush2.bf16.msra.mxu0 0
        %447 = vmatprep.subr.bf16.mxu0 0
        %448 = vmatpush2.bf16.msra.mxu0 0
        %449 = vmatprep.subr.bf16.mxu0 0
        %450 = vmatpush2.bf16.msra.mxu0 0
        %451 = vmatprep.subr.bf16.mxu0 0
        %452 = vmatpush2.bf16.msra.mxu0 0
        %453 = vmatprep.subr.bf16.mxu0 0
        %454 = vmatpush2.bf16.msra.mxu0 0
        %455 = vmatprep.subr.bf16.mxu0 0
        %456 = vmatpush2.bf16.msra.mxu0 0
        %457 = vmatprep.subr.bf16.mxu0 0
        %458 = vmatpush2.bf16.msra.mxu0 0
        %459 = vmatprep.mubr.bf16.mxu0 0
        %460 = vmatmul.mubr.bf16.gmra.mxu0 %v425
        %v461 = vpop.f32.mrf.mxu0
        %v462 = vadd.f32 %v388, %v461
        %v463 = vpop.f32.mrf.mxu0
        %v464 = vadd.f32 %v392, %v463
        %v465 = vpop.f32.mrf.mxu0
        %v466 = vpop.f32.mrf.mxu0
        %467 = vdwg.mxu0
        %v468 = vmax.f32 %v462, 0.0
        %v469 = vmax.f32 %v464, 0.0
        %v470 = vpack.c.bf16 %v468, %v468
        %v471 = vpack.c.bf16 %v469, %v469
        %v472 = vld [vmem:[%s366] sm:$0xf]
        %v473 = vld [vmem:[%s366 + $0x4] sm:$0xf]
        %v474 = vld [vmem:[%s366 + $0x8] sm:$0xf]
        %v475 = vld [vmem:[%s366 + $0xc] sm:$0xf]
        %v476 = vld [vmem:[%s366 + $0x10] sm:$0xf]
        %v477 = vld [vmem:[%s366 + $0x14] sm:$0xf]
        %v478 = vld [vmem:[%s366 + $0x18] sm:$0xf]
        %v479 = vld [vmem:[%s366 + $0x1c] sm:$0xf]
        %v480 = vld [vmem:[%s366 + $0x20] sm:$0xf]
        %v481 = vld [vmem:[%s366 + $0x24] sm:$0xf]
        %v482 = vld [vmem:[%s366 + $0x28] sm:$0xf]
        %v483 = vld [vmem:[%s366 + $0x2c] sm:$0xf]
        %v484 = vld [vmem:[%s366 + $0x30] sm:$0xf]
        %v485 = vld [vmem:[%s366 + $0x34] sm:$0xf]
        %v486 = vld [vmem:[%s366 + $0x38] sm:$0xf]
        %v487 = vld [vmem:[%s366 + $0x3c] sm:$0xf]
        %v488 = vld [vmem:[%s366 + $0x40] sm:$0xf]
        %v489 = vld [vmem:[%s366 + $0x44] sm:$0xf]
        %v490 = vld [vmem:[%s366 + $0x48] sm:$0xf]
        %v491 = vld [vmem:[%s366 + $0x4c] sm:$0xf]
        %v492 = vld [vmem:[%s371] sm:$0x1]
        %v494 = vlaneseq
        %v495 = vshrl.u32 %v494, 7
        %v496 = vsub.s32 0, %v495
        %v497 = vrot.slane %v492, %v496
        %v519 = vunpack.c.l.b16 %v472
        %v520 = vunpack.c.l.b16 %v473
        %v521 = vunpack.c.l.b16 %v474
        %v522 = vunpack.c.l.b16 %v475
        %v523 = vunpack.c.l.b16 %v476
        %v524 = vunpack.c.l.b16 %v477
        %v525 = vunpack.c.l.b16 %v478
        %v526 = vunpack.c.l.b16 %v479
        %v527 = vunpack.c.l.b16 %v480
        %v528 = vunpack.c.l.b16 %v481
        %v529 = vunpack.c.l.b16 %v482
        %v530 = vunpack.c.l.b16 %v483
        %v531 = vunpack.c.l.b16 %v484
        %v532 = vunpack.c.l.b16 %v485
        %v533 = vunpack.c.l.b16 %v486
        %v534 = vunpack.c.l.b16 %v487
        %v535 = vunpack.c.l.b16 %v488
        %v536 = vunpack.c.l.b16 %v489
        %v537 = vunpack.c.l.b16 %v490
        %v538 = vunpack.c.l.b16 %v491
        %v539 = vpack.c.b16 %v520, %v519
        %v540 = vpack.c.b16 %v522, %v521
        %v541 = vpack.c.b16 %v524, %v523
        %v542 = vpack.c.b16 %v526, %v525
        %v543 = vpack.c.b16 %v528, %v527
        %v544 = vpack.c.b16 %v530, %v529
        %v545 = vpack.c.b16 %v532, %v531
        %v546 = vpack.c.b16 %v534, %v533
        %v547 = vpack.c.b16 %v536, %v535
        %v548 = vpack.c.b16 %v538, %v537
        %v560 = vsel %vm423, %v471, 0
        %562 = vmatprep.subr.bf16.mxu0 0
        %563 = vmatpush1.bf16.msra.mxu0 %v546
        %564 = vmatprep.subr.bf16.mxu0 0
        %565 = vmatpush1.bf16.msra.mxu0 %v545
        %566 = vmatprep.subr.bf16.mxu0 0
        %567 = vmatpush1.bf16.msra.mxu0 %v544
        %568 = vmatprep.subr.bf16.mxu0 0
        %569 = vmatpush1.bf16.msra.mxu0 %v543
        %570 = vmatprep.subr.bf16.mxu0 0
        %571 = vmatpush1.bf16.msra.mxu0 %v542
        %572 = vmatprep.subr.bf16.mxu0 0
        %573 = vmatpush1.bf16.msra.mxu0 %v541
        %574 = vmatprep.subr.bf16.mxu0 0
        %575 = vmatpush1.bf16.msra.mxu0 %v540
        %576 = vmatprep.subr.bf16.mxu0 0
        %577 = vmatpush1.bf16.msra.mxu0 %v539
        %578 = vmatprep.subr.bf16.mxu0 0
        %579 = vmatpush2.bf16.msra.mxu0 0
        %580 = vmatprep.subr.bf16.mxu0 0
        %581 = vmatpush2.bf16.msra.mxu0 0
        %582 = vmatprep.subr.bf16.mxu0 0
        %583 = vmatpush2.bf16.msra.mxu0 0
        %584 = vmatprep.subr.bf16.mxu0 0
        %585 = vmatpush2.bf16.msra.mxu0 0
        %586 = vmatprep.subr.bf16.mxu0 0
        %587 = vmatpush2.bf16.msra.mxu0 0
        %588 = vmatprep.subr.bf16.mxu0 0
        %589 = vmatpush2.bf16.msra.mxu0 0
        %590 = vmatprep.subr.bf16.mxu0 0
        %591 = vmatpush2.bf16.msra.mxu0 %v548
        %592 = vmatprep.subr.bf16.mxu0 0
        %593 = vmatpush2.bf16.msra.mxu0 %v547
        %594 = vmatprep.mubr.bf16.mxu0 %v560
        %595 = vmatmul.mubr.bf16.gmra.mxu0 %v470
        %v596 = vpop.f32.mrf.mxu0
        %v597 = vadd.f32 %v497, %v596
        %v598 = vpop.f32.mrf.mxu0
        %v599 = vpop.f32.mrf.mxu0
        %v600 = vpop.f32.mrf.mxu0
        %601 = vdwg.mxu0
        %vm602 = vcmask 58368
        %603 = vst.msk [vmem:[%s346] sm:$0x3] %vm602, %v597
        %v604 = vld [vmem:[%s301 + $0x1] sm:$0x1]
        %v605 = vld [vmem:[%s301 + $0x3] sm:$0x1]
        %v606 = vpack.c.bf16 %v604, %v604
        %v607 = vpack.c.bf16 %v605, %v605
        %s608 = scalar_lea.vmem %s353, 32
        %v609 = vld [vmem:[%s608] sm:$0xff]
        %v610 = vld [vmem:[%s608 + $0x8] sm:$0xff]
        %v611 = vld [vmem:[%s608 + $0x10] sm:$0xff]
        %v612 = vld [vmem:[%s608 + $0x18] sm:$0xff]
        %s613 = scalar_lea.vmem %s359, 2
        %v614 = vld [vmem:[%s613] sm:$0x3]
        %v616 = vlaneseq
        %v617 = vshrl.u32 %v616, 7
        %v618 = vsub.s32 0, %v617
        %v619 = vrot.slane %v614, %v618
        %v620 = vlaneseq
        %v621 = vshrl.u32 %v620, 7
        %v622 = vsub.s32 1, %v621
        %v623 = vrot.slane %v614, %v622
        %v628 = vunpack.c.l.b16 %v606
        %v629 = vunpack.c.l.b16 %v607
        %v630 = vrot.slane %v629, 7
        %v631 = vsel %vm400, %v630, %v628
        %v632 = vpack.c.b16 %v631, %v631
        %v637 = vunpack.c.l.b16 %v609
        %v638 = vunpack.c.h.b16 %v609
        %v639 = vunpack.c.l.b16 %v610
        %v640 = vunpack.c.h.b16 %v610
        %v641 = vunpack.c.l.b16 %v611
        %v642 = vunpack.c.h.b16 %v611
        %v643 = vunpack.c.l.b16 %v612
        %v644 = vunpack.c.h.b16 %v612
        %v645 = vpack.c.b16 %v639, %v637
        %v646 = vpack.c.b16 %v640, %v638
        %v647 = vpack.c.b16 %v643, %v641
        %v648 = vpack.c.b16 %v644, %v642
        %v654 = vsel %vm423, %v632, 0
        %656 = vmatprep.subr.bf16.mxu0 0
        %657 = vmatpush1.bf16.msra.mxu0 0
        %658 = vmatprep.subr.bf16.mxu0 0
        %659 = vmatpush1.bf16.msra.mxu0 0
        %660 = vmatprep.subr.bf16.mxu0 0
        %661 = vmatpush1.bf16.msra.mxu0 0
        %662 = vmatprep.subr.bf16.mxu0 0
        %663 = vmatpush1.bf16.msra.mxu0 0
        %664 = vmatprep.subr.bf16.mxu0 0
        %665 = vmatpush1.bf16.msra.mxu0 0
        %666 = vmatprep.subr.bf16.mxu0 0
        %667 = vmatpush1.bf16.msra.mxu0 0
        %668 = vmatprep.subr.bf16.mxu0 %v648
        %669 = vmatpush1.bf16.msra.mxu0 %v647
        %670 = vmatprep.subr.bf16.mxu0 %v646
        %671 = vmatpush1.bf16.msra.mxu0 %v645
        %672 = vmatprep.subr.bf16.mxu0 0
        %673 = vmatpush2.bf16.msra.mxu0 0
        %674 = vmatprep.subr.bf16.mxu0 0
        %675 = vmatpush2.bf16.msra.mxu0 0
        %676 = vmatprep.subr.bf16.mxu0 0
        %677 = vmatpush2.bf16.msra.mxu0 0
        %678 = vmatprep.subr.bf16.mxu0 0
        %679 = vmatpush2.bf16.msra.mxu0 0
        %680 = vmatprep.subr.bf16.mxu0 0
        %681 = vmatpush2.bf16.msra.mxu0 0
        %682 = vmatprep.subr.bf16.mxu0 0
        %683 = vmatpush2.bf16.msra.mxu0 0
        %684 = vmatprep.subr.bf16.mxu0 0
        %685 = vmatpush2.bf16.msra.mxu0 0
        %686 = vmatprep.subr.bf16.mxu0 0
        %687 = vmatpush2.bf16.msra.mxu0 0
        %688 = vmatprep.mubr.bf16.mxu0 0
        %689 = vmatmul.mubr.bf16.gmra.mxu0 %v654
        %v690 = vpop.f32.mrf.mxu0
        %v691 = vadd.f32 %v619, %v690
        %v692 = vpop.f32.mrf.mxu0
        %v693 = vadd.f32 %v623, %v692
        %v694 = vpop.f32.mrf.mxu0
        %v695 = vpop.f32.mrf.mxu0
        %696 = vdwg.mxu0
        %v697 = vmax.f32 %v691, 0.0
        %v698 = vmax.f32 %v693, 0.0
        %v699 = vpack.c.bf16 %v697, %v697
        %v700 = vpack.c.bf16 %v698, %v698
        %s701 = scalar_lea.vmem %s366, 80
        %v702 = vld [vmem:[%s701] sm:$0xf]
        %v703 = vld [vmem:[%s701 + $0x4] sm:$0xf]
        %v704 = vld [vmem:[%s701 + $0x8] sm:$0xf]
        %v705 = vld [vmem:[%s701 + $0xc] sm:$0xf]
        %v706 = vld [vmem:[%s701 + $0x10] sm:$0xf]
        %v707 = vld [vmem:[%s701 + $0x14] sm:$0xf]
        %v708 = vld [vmem:[%s701 + $0x18] sm:$0xf]
        %v709 = vld [vmem:[%s701 + $0x1c] sm:$0xf]
        %v710 = vld [vmem:[%s701 + $0x20] sm:$0xf]
        %v711 = vld [vmem:[%s701 + $0x24] sm:$0xf]
        %v712 = vld [vmem:[%s701 + $0x28] sm:$0xf]
        %v713 = vld [vmem:[%s701 + $0x2c] sm:$0xf]
        %v714 = vld [vmem:[%s701 + $0x30] sm:$0xf]
        %v715 = vld [vmem:[%s701 + $0x34] sm:$0xf]
        %v716 = vld [vmem:[%s701 + $0x38] sm:$0xf]
        %v717 = vld [vmem:[%s701 + $0x3c] sm:$0xf]
        %v718 = vld [vmem:[%s701 + $0x40] sm:$0xf]
        %v719 = vld [vmem:[%s701 + $0x44] sm:$0xf]
        %v720 = vld [vmem:[%s701 + $0x48] sm:$0xf]
        %v721 = vld [vmem:[%s701 + $0x4c] sm:$0xf]
        %s722 = scalar_lea.vmem %s371, 1
        %v723 = vld [vmem:[%s722] sm:$0x1]
        %v725 = vlaneseq
        %v726 = vshrl.u32 %v725, 7
        %v727 = vsub.s32 0, %v726
        %v728 = vrot.slane %v723, %v727
        %v750 = vunpack.c.l.b16 %v702
        %v751 = vunpack.c.l.b16 %v703
        %v752 = vunpack.c.l.b16 %v704
        %v753 = vunpack.c.l.b16 %v705
        %v754 = vunpack.c.l.b16 %v706
        %v755 = vunpack.c.l.b16 %v707
        %v756 = vunpack.c.l.b16 %v708
        %v757 = vunpack.c.l.b16 %v709
        %v758 = vunpack.c.l.b16 %v710
        %v759 = vunpack.c.l.b16 %v711
        %v760 = vunpack.c.l.b16 %v712
        %v761 = vunpack.c.l.b16 %v713
        %v762 = vunpack.c.l.b16 %v714
        %v763 = vunpack.c.l.b16 %v715
        %v764 = vunpack.c.l.b16 %v716
        %v765 = vunpack.c.l.b16 %v717
        %v766 = vunpack.c.l.b16 %v718
        %v767 = vunpack.c.l.b16 %v719
        %v768 = vunpack.c.l.b16 %v720
        %v769 = vunpack.c.l.b16 %v721
        %v770 = vpack.c.b16 %v751, %v750
        %v771 = vpack.c.b16 %v753, %v752
        %v772 = vpack.c.b16 %v755, %v754
        %v773 = vpack.c.b16 %v757, %v756
        %v774 = vpack.c.b16 %v759, %v758
        %v775 = vpack.c.b16 %v761, %v760
        %v776 = vpack.c.b16 %v763, %v762
        %v777 = vpack.c.b16 %v765, %v764
        %v778 = vpack.c.b16 %v767, %v766
        %v779 = vpack.c.b16 %v769, %v768
        %v791 = vsel %vm423, %v700, 0
        %793 = vmatprep.subr.bf16.mxu0 0
        %794 = vmatpush1.bf16.msra.mxu0 %v777
        %795 = vmatprep.subr.bf16.mxu0 0
        %796 = vmatpush1.bf16.msra.mxu0 %v776
        %797 = vmatprep.subr.bf16.mxu0 0
        %798 = vmatpush1.bf16.msra.mxu0 %v775
        %799 = vmatprep.subr.bf16.mxu0 0
        %800 = vmatpush1.bf16.msra.mxu0 %v774
        %801 = vmatprep.subr.bf16.mxu0 0
        %802 = vmatpush1.bf16.msra.mxu0 %v773
        %803 = vmatprep.subr.bf16.mxu0 0
        %804 = vmatpush1.bf16.msra.mxu0 %v772
        %805 = vmatprep.subr.bf16.mxu0 0
        %806 = vmatpush1.bf16.msra.mxu0 %v771
        %807 = vmatprep.subr.bf16.mxu0 0
        %808 = vmatpush1.bf16.msra.mxu0 %v770
        %809 = vmatprep.subr.bf16.mxu0 0
        %810 = vmatpush2.bf16.msra.mxu0 0
        %811 = vmatprep.subr.bf16.mxu0 0
        %812 = vmatpush2.bf16.msra.mxu0 0
        %813 = vmatprep.subr.bf16.mxu0 0
        %814 = vmatpush2.bf16.msra.mxu0 0
        %815 = vmatprep.subr.bf16.mxu0 0
        %816 = vmatpush2.bf16.msra.mxu0 0
        %817 = vmatprep.subr.bf16.mxu0 0
        %818 = vmatpush2.bf16.msra.mxu0 0
        %819 = vmatprep.subr.bf16.mxu0 0
        %820 = vmatpush2.bf16.msra.mxu0 0
        %821 = vmatprep.subr.bf16.mxu0 0
        %822 = vmatpush2.bf16.msra.mxu0 %v779
        %823 = vmatprep.subr.bf16.mxu0 0
        %824 = vmatpush2.bf16.msra.mxu0 %v778
        %825 = vmatprep.mubr.bf16.mxu0 %v791
        %826 = vmatmul.mubr.bf16.gmra.mxu0 %v699
        %v827 = vpop.f32.mrf.mxu0
        %v828 = vadd.f32 %v728, %v827
        %v829 = vpop.f32.mrf.mxu0
        %v830 = vpop.f32.mrf.mxu0
        %v831 = vpop.f32.mrf.mxu0
        %832 = vdwg.mxu0
        %s833 = scalar_lea.vmem %s346, 2 [#allocation3]
        %834 = vst.msk [vmem:[%s833] sm:$0x3] %vm602, %v828
        %s835 = sand.u32 %s173, 1
        %s836 = scalar_lea.sflag [#allocation4], %s835
        %s837 = sand.u32 %s173, 1
        %s838 = smul.addr %s837, 4
        %s839 = scalar_lea.vmem [#allocation3], %s838
        // Predicated region
        $region75: #{tpu_custom_call.1} parent=69 // pred_check
          %p840 = pneg %p183
        $region76: #{tpu_custom_call.1} parent=69 // pred_check_branch
          %842 = sbr.rel (%p840) target = $region78
        $region77: #{tpu_custom_call.1} parent=69 // pred_region
          %s843 = smul.u32 2, %s24
          %s845 = ssub.s32 64, 64
          %846 = vsyncadd %s836, %s845
          %s847 = sadd.s32 %s23, %s843
          %s848 = smul.addr %s847, 32
          %s849 = scalar_lea.hbm %s5, %s848
          %s850 = sshll.u32 %s839, 4
          %s851 = int_to_ptr.vmem [resolvable:$true] %s850
          %856 = dma.vmem_to_hbm [thread:$0]  %s851, 64, %s849, %s836, 32, 32, 2
        $region78: #{tpu_custom_call.1} parent=69 // pred_fallthru
          _
      $region70: #{tpu_custom_call.1} parent=5 // pred_fallthru
        _
      %p857 = scmp.le.s32.totalorder 2, %s14
      // Predicated region
      $region79: #{tpu_custom_call.1} parent=5 // pred_check
        %p858 = pneg %p857
      $region80: #{tpu_custom_call.1} parent=5 // pred_check_branch
        %860 = sbr.rel (%p858) target = $region82
      $region81: #{tpu_custom_call.1} parent=5 // pred_region
        %s861 = ssub.s32 %s14, 2
        // Predicated region
        $region83: #{tpu_custom_call.1} parent=81 // pred_check
          %p862 = pneg %p189
        $region84: #{tpu_custom_call.1} parent=81 // pred_check_branch
          %864 = sbr.rel (%p862) target = $region86
        $region85: #{tpu_custom_call.1} parent=81 // pred_region
          %s865 = sand.u32 %s174, 1
          %s866 = scalar_lea.sflag [#allocation4], %s865
          %s867 = sand.u32 %s174, 1
          %s868 = smul.addr %s867, 4
          %s869 = scalar_lea.vmem [#allocation3], %s868
          %870 = dma.done %s866, 64
        $region86: #{tpu_custom_call.1} parent=81 // pred_fallthru
          _
      $region82: #{tpu_custom_call.1} parent=5 // pred_fallthru
        _
    $region6: #{tpu_custom_call.1} parent=1 // loop_footer
      %s18 = sadd.s32 1, %s14
    $region7: #{tpu_custom_call.1} parent=1 // loop_footer_branch
      %13 = sbr.rel target = $region3
    $region8: #{tpu_custom_call.1} parent=1 // loop_exit
      _
    %871 = vsyncpa [#allocation4], 1
    %s872 = scalar_lea.sflag [#allocation4], 1
    %873 = vsyncpa %s872, 1

</llo_original>
